<compile_context>
chip_gen: v5e
topology: v5e:2x2
jax: 0.10.0
libtpu: 0.0.40
codegen_flags: <defaults>
</compile_context>

<pallas_src>
import jax
import jax.numpy as jnp
from jax.experimental import pallas as pl
from jax.experimental.pallas import tpu as pltpu

# ---------------------------------------------------------------------------
# Configuration (small synthetic shapes consistent with the module).
# ---------------------------------------------------------------------------
FEATURE_DIM = 32                       # C
NUM_HEAD = 4                           # H
GROUP_DIM = FEATURE_DIM // NUM_HEAD    # G = 8
T_STEPS = 2                            # T (spiking timesteps)
BATCH = 2                              # Bt (true batch);  PyTorch B = T * Bt
SEQ = 64                               # N (num_patches == STM num_dim)
FFN_RATIO = 2
MID_DIM = FEATURE_DIM * FFN_RATIO      # FFN hidden dim
LANES = BATCH * SEQ                    # L = 128 (lanes per timestep slice)
SLAB = T_STEPS * LANES                 # 256 (lane extent of the 2-D slab)

LIF_THRESH = 1.0
LIF_TAU = 0.5
BN_EPS = 1e-5


# ---------------------------------------------------------------------------
# Pallas kernel: the full Encoder forward in one invocation.
# ---------------------------------------------------------------------------
def encoder_kernel(x_ref,
                   w1_ref, b1_ref,      # token_mix.fc1 : folded Conv1d(C->C)+BN
                   wm_ref,              # STM per-head weights, block-diag over Bt (H,L,L)
                   w2_ref, b2_ref,      # token_mix.fc2 : folded Conv1d(C->C)+BN
                   wf1_ref, bf1_ref,    # channel_mix.fc1: folded Conv1d(C->M)+BN
                   wf2_ref, bf2_ref,    # channel_mix.fc2: folded Conv1d(M->C)+BN
                   o_ref):

    def lif(cur, out_dtype):
        # LIFSpike: sequential membrane integration over T on 128-lane aligned slices.
        # Hard reset via the bool mask (no 1-s / multiply); spikes emitted directly in
        # the dtype the consumer needs (bf16 when they only feed a matmul).
        rows = cur.shape[0]
        mem = jnp.zeros((rows, LANES), jnp.float32)
        outs = []
        for t in range(T_STEPS):                     # T is small & static -> unrolled
            mem = mem * LIF_TAU + cur[:, t * LANES:(t + 1) * LANES]
            spk = mem > LIF_THRESH
            outs.append(spk.astype(out_dtype))
            mem = jnp.where(spk, 0.0, mem)
        return jnp.concatenate(outs, axis=1)         # (rows, T*L), lane-aligned concat

    def conv_bn(w_ref, b_ref, s_bf16):
        # Folded 1x1 Conv1d + eval-mode BN: ONE (Cout,Cin)@(Cin,T*L) MXU matmul + bias.
        y = jnp.dot(w_ref[...], s_bf16, preferred_element_type=jnp.float32)
        return y + b_ref[...]                        # (Cout,1) broadcast over lanes

    # ---------------- TokenMixer ----------------
    s0 = lif(x_ref[...], jnp.bfloat16)               # fc1 leading LIF
    h1 = conv_bn(w1_ref, b1_ref, s0)                 # (C, T*L)
    s1 = lif(h1, jnp.float32)                        # feeds STM; keep f32 so the 8-row
                                                     # head reshape stays tile-aligned

    # STM: per-head Linear(N, N) over the token dim.  Bt is folded into the lane axis,
    # so each head's weight is a (L, L) block-diagonal (Bt copies of W_h^T).  Batched
    # over H with one einsum per timestep slice (the t slices are separate contractions).
    wm = wm_ref[...]                                 # (H, L, L) bf16, loaded once
    mix_parts = []
    for t in range(T_STEPS):
        st = s1[:, t * LANES:(t + 1) * LANES]        # (C, L) f32, aligned lane slice
        st = st.reshape(NUM_HEAD, GROUP_DIM, LANES).astype(jnp.bfloat16)
        yt = jnp.einsum("hgl,hlm->hgm", st, wm,
                        preferred_element_type=jnp.float32)       # (H, G, L)
        mix_parts.append(yt.reshape(FEATURE_DIM, LANES))
    mix = jnp.concatenate(mix_parts, axis=1)         # (C, T*L)

    s2 = lif(mix, jnp.bfloat16)                      # fc2 leading LIF
    h2 = conv_bn(w2_ref, b2_ref, s2)                 # (C, T*L)

    x1 = x_ref[...] + h2                             # residual 1: x + token_mix(x)
    o_ref[...] = x1                                  # stage residual in VMEM output

    # ---------------- FFN (channel mix) ----------------
    s3 = lif(x1, jnp.bfloat16)
    f1 = conv_bn(wf1_ref, bf1_ref, s3)               # (M, T*L)
    s4 = lif(f1, jnp.bfloat16)
    f2 = conv_bn(wf2_ref, bf2_ref, s4)               # (C, T*L)

    o_ref[...] = o_ref[...] + f2                     # residual 2: x1 + channel_mix(x1)


# ---------------------------------------------------------------------------
# Wrapper: lane-dense re-layout + single pallas_call.
# ---------------------------------------------------------------------------
def encoder_forward(x, kp):
    """x: (B, C, N) with B = T * Bt (LIFSpike convention b = t*Bt + bt)."""
    B, C, N = x.shape
    assert B % T_STEPS == 0
    Bt = B // T_STEPS
    L = Bt * N
    # (B, C, N) -> (T, Bt, C, N) -> (C, T, Bt, N) -> lane-dense slab (C, T*Bt*N)
    x_slab = (x.reshape(T_STEPS, Bt, C, N)
               .transpose(2, 0, 1, 3)
               .reshape(C, T_STEPS * L))

    vmem = pl.BlockSpec(memory_space=pltpu.MemorySpace.VMEM)
    out_slab = pl.pallas_call(
        encoder_kernel,
        out_shape=jax.ShapeDtypeStruct((C, T_STEPS * L), jnp.float32),
        in_specs=[vmem] * 10,
        out_specs=vmem,
    )(x_slab,
      kp["w1"], kp["b1"], kp["wm"], kp["w2"], kp["b2"],
      kp["wf1"], kp["bf1"], kp["wf2"], kp["bf2"])

    return (out_slab.reshape(C, T_STEPS, Bt, N)
                    .transpose(1, 2, 0, 3)
                    .reshape(B, C, N))


# ---------------------------------------------------------------------------
# Deterministic parameters (Conv1d k=1 no-bias + eval-mode BN, folded).
# ---------------------------------------------------------------------------
def make_conv_bn(key, c_out, c_in):
    kw, km = jax.random.split(key)
    w = jax.random.normal(kw, (c_out, c_in), jnp.float32) * (2.0 / c_in) ** 0.5
    gamma = jnp.ones((c_out,), jnp.float32)                 # BN weight
    beta = jnp.zeros((c_out,), jnp.float32)                 # BN bias
    mean = jax.random.normal(km, (c_out,), jnp.float32) * 0.05
    var = jnp.ones((c_out,), jnp.float32)
    scale = gamma / jnp.sqrt(var + BN_EPS)
    return scale[:, None] * w, beta - scale * mean          # W_eff (Cout,Cin), b_eff (Cout,)


def make_params(key):
    k1, k2, k3, k4, km = jax.random.split(key, 5)
    w1, b1 = make_conv_bn(k1, FEATURE_DIM, FEATURE_DIM)     # token_mix.fc1
    w2, b2 = make_conv_bn(k2, FEATURE_DIM, FEATURE_DIM)     # token_mix.fc2
    wf1, bf1 = make_conv_bn(k3, MID_DIM, FEATURE_DIM)       # channel_mix.fc1
    wf2, bf2 = make_conv_bn(k4, FEATURE_DIM, MID_DIM)       # channel_mix.fc2
    # STM linear_mix: kaiming-normal (fan_out) Linear(N, N) per head, no bias.
    wm = jax.random.normal(km, (NUM_HEAD, SEQ, SEQ), jnp.float32) * (2.0 / SEQ) ** 0.5
    return dict(w1=w1, b1=b1, w2=w2, b2=b2, wf1=wf1, bf1=bf1, wf2=wf2, bf2=bf2, wm=wm)


def pack_kernel_params(p):
    """Kernel layout: bf16 weights, (C,1) f32 biases, block-diag-over-Bt STM weights."""
    eye = jnp.eye(BATCH, dtype=jnp.float32)
    # y = s @ kron(I_Bt, W_h^T) applies Linear W_h independently per batch element of
    # the bt-major, n-minor lane layout produced by the wrapper transpose.
    wm_bd = jnp.stack([jnp.kron(eye, p["wm"][h].T) for h in range(NUM_HEAD)])  # (H, L, L)

    def col(b):
        return b[:, None].astype(jnp.float32)               # (C, 1)

    return dict(
        w1=p["w1"].astype(jnp.bfloat16), b1=col(p["b1"]),
        wm=wm_bd.astype(jnp.bfloat16),
        w2=p["w2"].astype(jnp.bfloat16), b2=col(p["b2"]),
        wf1=p["wf1"].astype(jnp.bfloat16), bf1=col(p["bf1"]),
        wf2=p["wf2"].astype(jnp.bfloat16), bf2=col(p["bf2"]),
    )


# ---------------------------------------------------------------------------
# Pure-JAX reference (mirrors the PyTorch forward, same bf16-rounded weights).
# ---------------------------------------------------------------------------
def lif_ref(x):
    B, C, N = x.shape
    Bt = B // T_STEPS
    xt = x.reshape(T_STEPS, Bt, C, N)
    mem = jnp.zeros((Bt, C, N), jnp.float32)
    outs = []
    for t in range(T_STEPS):
        mem = mem * LIF_TAU + xt[t]
        s = (mem > LIF_THRESH).astype(jnp.float32)
        mem = mem * (1.0 - s)
        outs.append(s)
    return jnp.stack(outs, 0).reshape(B, C, N)


def conv_bn_ref(w, b, x):
    wr = w.astype(jnp.bfloat16).astype(jnp.float32)
    return jnp.einsum("oc,bcn->bon", wr, x) + b[None, :, None]


def stm_ref(wm, x):
    B, C, N = x.shape
    xr = x.reshape(B, NUM_HEAD, GROUP_DIM, N)
    outs = []
    for h in range(NUM_HEAD):
        wr = wm[h].astype(jnp.bfloat16).astype(jnp.float32)
        outs.append(jnp.einsum("bgm,nm->bgn", xr[:, h], wr))   # nn.Linear: x @ W^T
    return jnp.stack(outs, axis=1).reshape(B, C, N)


def encoder_ref(x, p):
    s0 = lif_ref(x)
    h1 = conv_bn_ref(p["w1"], p["b1"], s0)
    s1 = lif_ref(h1)
    mix = stm_ref(p["wm"], s1)
    s2 = lif_ref(mix)
    h2 = conv_bn_ref(p["w2"], p["b2"], s2)
    x1 = x + h2
    s3 = lif_ref(x1)
    f1 = conv_bn_ref(p["wf1"], p["bf1"], s3)
    s4 = lif_ref(f1)
    f2 = conv_bn_ref(p["wf2"], p["bf2"], s4)
    return x1 + f2


if __name__ == "__main__":
    key = jax.random.PRNGKey(0)
    kx, kp = jax.random.split(key)

    B = T_STEPS * BATCH
    x = jax.random.normal(kx, (B, FEATURE_DIM, SEQ), jnp.float32)

    params = make_params(kp)
    kparams = pack_kernel_params(params)

    fwd = jax.jit(encoder_forward)
    out = jax.block_until_ready(fwd(x, kparams))

    assert out.shape == (B, FEATURE_DIM, SEQ)
    assert bool(jnp.isfinite(out).all())

    # Correctness check vs. the pure-JAX reference.  A small fraction of mismatches is
    # tolerated only to absorb rare threshold-adjacent spike flips caused by
    # accumulation-order differences between the MXU kernel and the XLA reference.
    ref = encoder_ref(x, params)
    tol = 1e-2 * (1.0 + jnp.abs(ref))
    frac_bad = float(jnp.mean((jnp.abs(out - ref) > tol).astype(jnp.float32)))
    assert frac_bad < 0.02, f"mismatch fraction {frac_bad}"

    print("KERNEL_OK")
</pallas_src>

<mosaic_0001>
module attributes {stable_mosaic.version = 11 : i64} {
  func.func @encoder_kernel(%arg0: memref<32x256xf32, #tpu.memory_space<vmem>>, %arg1: memref<32x32xbf16, #tpu.memory_space<vmem>>, %arg2: memref<32x1xf32, #tpu.memory_space<vmem>>, %arg3: memref<4x128x128xbf16, #tpu.memory_space<vmem>>, %arg4: memref<32x32xbf16, #tpu.memory_space<vmem>>, %arg5: memref<32x1xf32, #tpu.memory_space<vmem>>, %arg6: memref<64x32xbf16, #tpu.memory_space<vmem>>, %arg7: memref<64x1xf32, #tpu.memory_space<vmem>>, %arg8: memref<32x64xbf16, #tpu.memory_space<vmem>>, %arg9: memref<32x1xf32, #tpu.memory_space<vmem>>, %arg10: memref<32x256xf32, #tpu.memory_space<vmem>>) attributes {dimension_semantics = [], scalar_prefetch = 0 : i64, scratch_operands = 0 : i64, tpu.core_type = #tpu.core_type<tc>} {
    %c0 = arith.constant 0 : index
    %c0_0 = arith.constant 0 : index
    %0 = vector.load %arg0[%c0, %c0_0] : memref<32x256xf32, #tpu.memory_space<vmem>>, vector<32x256xf32>
    %cst = arith.constant 0.000000e+00 : f32
    %1 = vector.broadcast %cst : f32 to vector<32x128xf32>
    %cst_1 = arith.constant 5.000000e-01 : f32
    %2 = vector.broadcast %cst_1 : f32 to vector<32x128xf32>
    %3 = arith.mulf %1, %2 : vector<32x128xf32>
    %4 = vector.extract_strided_slice %0 {offsets = [0, 0], sizes = [32, 128], strides = [1, 1]} : vector<32x256xf32> to vector<32x128xf32>
    %5 = arith.addf %3, %4 : vector<32x128xf32>
    %cst_2 = arith.constant 1.000000e+00 : f32
    %6 = vector.broadcast %cst_2 : f32 to vector<32x128xf32>
    %7 = arith.cmpf ogt, %5, %6 : vector<32x128xf32>
    %8 = arith.extui %7 : vector<32x128xi1> to vector<32x128xi32>
    %9 = arith.sitofp %8 : vector<32x128xi32> to vector<32x128xf32>
    %10 = arith.truncf %9 : vector<32x128xf32> to vector<32x128xbf16>
    %cst_3 = arith.constant 0.000000e+00 : f32
    %11 = vector.broadcast %cst_3 : f32 to vector<32x128xf32>
    %12 = arith.select %7, %11, %5 : vector<32x128xi1>, vector<32x128xf32>
    %cst_4 = arith.constant 5.000000e-01 : f32
    %13 = vector.broadcast %cst_4 : f32 to vector<32x128xf32>
    %14 = arith.mulf %12, %13 : vector<32x128xf32>
    %15 = vector.extract_strided_slice %0 {offsets = [0, 128], sizes = [32, 128], strides = [1, 1]} : vector<32x256xf32> to vector<32x128xf32>
    %16 = arith.addf %14, %15 : vector<32x128xf32>
    %cst_5 = arith.constant 1.000000e+00 : f32
    %17 = vector.broadcast %cst_5 : f32 to vector<32x128xf32>
    %18 = arith.cmpf ogt, %16, %17 : vector<32x128xf32>
    %19 = arith.extui %18 : vector<32x128xi1> to vector<32x128xi32>
    %20 = arith.sitofp %19 : vector<32x128xi32> to vector<32x128xf32>
    %21 = arith.truncf %20 : vector<32x128xf32> to vector<32x128xbf16>
    %22 = tpu.concatenate %10, %21 in 1 : vector<32x128xbf16>, vector<32x128xbf16> -> vector<32x256xbf16>
    %c0_6 = arith.constant 0 : index
    %c0_7 = arith.constant 0 : index
    %23 = vector.load %arg1[%c0_6, %c0_7] : memref<32x32xbf16, #tpu.memory_space<vmem>>, vector<32x32xbf16>
    %cst_8 = arith.constant dense<0.000000e+00> : vector<32x256xf32>
    %24 = tpu.matmul %23, %22, %cst_8 {dimension_numbers = #tpu.dot_dimension_numbers<[1], [0], [0], [1], [0, 0, 1, 1], [], []>} : vector<32x32xbf16>, vector<32x256xbf16>, vector<32x256xf32> -> vector<32x256xf32>
    %c0_9 = arith.constant 0 : index
    %c0_10 = arith.constant 0 : index
    %25 = vector.load %arg2[%c0_9, %c0_10] : memref<32x1xf32, #tpu.memory_space<vmem>>, vector<32x1xf32>
    %26 = vector.broadcast %25 : vector<32x1xf32> to vector<32x256xf32>
    %27 = arith.addf %24, %26 : vector<32x256xf32>
    %cst_11 = arith.constant 0.000000e+00 : f32
    %28 = vector.broadcast %cst_11 : f32 to vector<32x128xf32>
    %cst_12 = arith.constant 5.000000e-01 : f32
    %29 = vector.broadcast %cst_12 : f32 to vector<32x128xf32>
    %30 = arith.mulf %28, %29 : vector<32x128xf32>
    %31 = vector.extract_strided_slice %27 {offsets = [0, 0], sizes = [32, 128], strides = [1, 1]} : vector<32x256xf32> to vector<32x128xf32>
    %32 = arith.addf %30, %31 : vector<32x128xf32>
    %cst_13 = arith.constant 1.000000e+00 : f32
    %33 = vector.broadcast %cst_13 : f32 to vector<32x128xf32>
    %34 = arith.cmpf ogt, %32, %33 : vector<32x128xf32>
    %35 = arith.extui %34 : vector<32x128xi1> to vector<32x128xi32>
    %36 = arith.sitofp %35 : vector<32x128xi32> to vector<32x128xf32>
    %cst_14 = arith.constant 0.000000e+00 : f32
    %37 = vector.broadcast %cst_14 : f32 to vector<32x128xf32>
    %38 = arith.select %34, %37, %32 : vector<32x128xi1>, vector<32x128xf32>
    %cst_15 = arith.constant 5.000000e-01 : f32
    %39 = vector.broadcast %cst_15 : f32 to vector<32x128xf32>
    %40 = arith.mulf %38, %39 : vector<32x128xf32>
    %41 = vector.extract_strided_slice %27 {offsets = [0, 128], sizes = [32, 128], strides = [1, 1]} : vector<32x256xf32> to vector<32x128xf32>
    %42 = arith.addf %40, %41 : vector<32x128xf32>
    %cst_16 = arith.constant 1.000000e+00 : f32
    %43 = vector.broadcast %cst_16 : f32 to vector<32x128xf32>
    %44 = arith.cmpf ogt, %42, %43 : vector<32x128xf32>
    %45 = arith.extui %44 : vector<32x128xi1> to vector<32x128xi32>
    %46 = arith.sitofp %45 : vector<32x128xi32> to vector<32x128xf32>
    %47 = tpu.concatenate %36, %46 in 1 : vector<32x128xf32>, vector<32x128xf32> -> vector<32x256xf32>
    %c0_17 = arith.constant 0 : index
    %c0_18 = arith.constant 0 : index
    %c0_19 = arith.constant 0 : index
    %48 = vector.load %arg3[%c0_17, %c0_18, %c0_19] : memref<4x128x128xbf16, #tpu.memory_space<vmem>>, vector<4x128x128xbf16>
    %49 = vector.extract_strided_slice %47 {offsets = [0, 0], sizes = [32, 128], strides = [1, 1]} : vector<32x256xf32> to vector<32x128xf32>
    %50 = vector.shape_cast %49 : vector<32x128xf32> to vector<4x8x128xf32>
    %51 = arith.truncf %50 : vector<4x8x128xf32> to vector<4x8x128xbf16>
    "tpu.trace_start"() <{level = 10 : i32, message = "hgl,hlm->hgm"}> : () -> ()
    %cst_20 = arith.constant dense<0.000000e+00> : vector<4x8x128xf32>
    %52 = tpu.matmul %51, %48, %cst_20 {dimension_numbers = #tpu.dot_dimension_numbers<[2], [1], [1], [2], [0, 0, 0, 1, 1, 2], [0], [0]>} : vector<4x8x128xbf16>, vector<4x128x128xbf16>, vector<4x8x128xf32> -> vector<4x8x128xf32>
    "tpu.trace_stop"() : () -> ()
    %53 = vector.shape_cast %52 : vector<4x8x128xf32> to vector<32x128xf32>
    %54 = vector.extract_strided_slice %47 {offsets = [0, 128], sizes = [32, 128], strides = [1, 1]} : vector<32x256xf32> to vector<32x128xf32>
    %55 = vector.shape_cast %54 : vector<32x128xf32> to vector<4x8x128xf32>
    %56 = arith.truncf %55 : vector<4x8x128xf32> to vector<4x8x128xbf16>
    "tpu.trace_start"() <{level = 10 : i32, message = "hgl,hlm->hgm"}> : () -> ()
    %cst_21 = arith.constant dense<0.000000e+00> : vector<4x8x128xf32>
    %57 = tpu.matmul %56, %48, %cst_21 {dimension_numbers = #tpu.dot_dimension_numbers<[2], [1], [1], [2], [0, 0, 0, 1, 1, 2], [0], [0]>} : vector<4x8x128xbf16>, vector<4x128x128xbf16>, vector<4x8x128xf32> -> vector<4x8x128xf32>
    "tpu.trace_stop"() : () -> ()
    %58 = vector.shape_cast %57 : vector<4x8x128xf32> to vector<32x128xf32>
    %59 = tpu.concatenate %53, %58 in 1 : vector<32x128xf32>, vector<32x128xf32> -> vector<32x256xf32>
    %cst_22 = arith.constant 0.000000e+00 : f32
    %60 = vector.broadcast %cst_22 : f32 to vector<32x128xf32>
    %cst_23 = arith.constant 5.000000e-01 : f32
    %61 = vector.broadcast %cst_23 : f32 to vector<32x128xf32>
    %62 = arith.mulf %60, %61 : vector<32x128xf32>
    %63 = vector.extract_strided_slice %59 {offsets = [0, 0], sizes = [32, 128], strides = [1, 1]} : vector<32x256xf32> to vector<32x128xf32>
    %64 = arith.addf %62, %63 : vector<32x128xf32>
    %cst_24 = arith.constant 1.000000e+00 : f32
    %65 = vector.broadcast %cst_24 : f32 to vector<32x128xf32>
    %66 = arith.cmpf ogt, %64, %65 : vector<32x128xf32>
    %67 = arith.extui %66 : vector<32x128xi1> to vector<32x128xi32>
    %68 = arith.sitofp %67 : vector<32x128xi32> to vector<32x128xf32>
    %69 = arith.truncf %68 : vector<32x128xf32> to vector<32x128xbf16>
    %cst_25 = arith.constant 0.000000e+00 : f32
    %70 = vector.broadcast %cst_25 : f32 to vector<32x128xf32>
    %71 = arith.select %66, %70, %64 : vector<32x128xi1>, vector<32x128xf32>
    %cst_26 = arith.constant 5.000000e-01 : f32
    %72 = vector.broadcast %cst_26 : f32 to vector<32x128xf32>
    %73 = arith.mulf %71, %72 : vector<32x128xf32>
    %74 = vector.extract_strided_slice %59 {offsets = [0, 128], sizes = [32, 128], strides = [1, 1]} : vector<32x256xf32> to vector<32x128xf32>
    %75 = arith.addf %73, %74 : vector<32x128xf32>
    %cst_27 = arith.constant 1.000000e+00 : f32
    %76 = vector.broadcast %cst_27 : f32 to vector<32x128xf32>
    %77 = arith.cmpf ogt, %75, %76 : vector<32x128xf32>
    %78 = arith.extui %77 : vector<32x128xi1> to vector<32x128xi32>
    %79 = arith.sitofp %78 : vector<32x128xi32> to vector<32x128xf32>
    %80 = arith.truncf %79 : vector<32x128xf32> to vector<32x128xbf16>
    %81 = tpu.concatenate %69, %80 in 1 : vector<32x128xbf16>, vector<32x128xbf16> -> vector<32x256xbf16>
    %c0_28 = arith.constant 0 : index
    %c0_29 = arith.constant 0 : index
    %82 = vector.load %arg4[%c0_28, %c0_29] : memref<32x32xbf16, #tpu.memory_space<vmem>>, vector<32x32xbf16>
    %cst_30 = arith.constant dense<0.000000e+00> : vector<32x256xf32>
    %83 = tpu.matmul %82, %81, %cst_30 {dimension_numbers = #tpu.dot_dimension_numbers<[1], [0], [0], [1], [0, 0, 1, 1], [], []>} : vector<32x32xbf16>, vector<32x256xbf16>, vector<32x256xf32> -> vector<32x256xf32>
    %c0_31 = arith.constant 0 : index
    %c0_32 = arith.constant 0 : index
    %84 = vector.load %arg5[%c0_31, %c0_32] : memref<32x1xf32, #tpu.memory_space<vmem>>, vector<32x1xf32>
    %85 = vector.broadcast %84 : vector<32x1xf32> to vector<32x256xf32>
    %86 = arith.addf %83, %85 : vector<32x256xf32>
    %c0_33 = arith.constant 0 : index
    %c0_34 = arith.constant 0 : index
    %87 = vector.load %arg0[%c0_33, %c0_34] : memref<32x256xf32, #tpu.memory_space<vmem>>, vector<32x256xf32>
    %88 = arith.addf %87, %86 : vector<32x256xf32>
    %c0_35 = arith.constant 0 : index
    %c0_36 = arith.constant 0 : index
    %89 = vector.load %arg10[%c0_35, %c0_36] : memref<32x256xf32, #tpu.memory_space<vmem>>, vector<32x256xf32>
    tpu.vector_store %arg10[%c0_35, %c0_36], %88 {strides = array<i32>} : memref<32x256xf32, #tpu.memory_space<vmem>>, vector<32x256xf32>,
    %cst_37 = arith.constant 0.000000e+00 : f32
    %90 = vector.broadcast %cst_37 : f32 to vector<32x128xf32>
    %cst_38 = arith.constant 5.000000e-01 : f32
    %91 = vector.broadcast %cst_38 : f32 to vector<32x128xf32>
    %92 = arith.mulf %90, %91 : vector<32x128xf32>
    %93 = vector.extract_strided_slice %88 {offsets = [0, 0], sizes = [32, 128], strides = [1, 1]} : vector<32x256xf32> to vector<32x128xf32>
    %94 = arith.addf %92, %93 : vector<32x128xf32>
    %cst_39 = arith.constant 1.000000e+00 : f32
    %95 = vector.broadcast %cst_39 : f32 to vector<32x128xf32>
    %96 = arith.cmpf ogt, %94, %95 : vector<32x128xf32>
    %97 = arith.extui %96 : vector<32x128xi1> to vector<32x128xi32>
    %98 = arith.sitofp %97 : vector<32x128xi32> to vector<32x128xf32>
    %99 = arith.truncf %98 : vector<32x128xf32> to vector<32x128xbf16>
    %cst_40 = arith.constant 0.000000e+00 : f32
    %100 = vector.broadcast %cst_40 : f32 to vector<32x128xf32>
    %101 = arith.select %96, %100, %94 : vector<32x128xi1>, vector<32x128xf32>
    %cst_41 = arith.constant 5.000000e-01 : f32
    %102 = vector.broadcast %cst_41 : f32 to vector<32x128xf32>
    %103 = arith.mulf %101, %102 : vector<32x128xf32>
    %104 = vector.extract_strided_slice %88 {offsets = [0, 128], sizes = [32, 128], strides = [1, 1]} : vector<32x256xf32> to vector<32x128xf32>
    %105 = arith.addf %103, %104 : vector<32x128xf32>
    %cst_42 = arith.constant 1.000000e+00 : f32
    %106 = vector.broadcast %cst_42 : f32 to vector<32x128xf32>
    %107 = arith.cmpf ogt, %105, %106 : vector<32x128xf32>
    %108 = arith.extui %107 : vector<32x128xi1> to vector<32x128xi32>
    %109 = arith.sitofp %108 : vector<32x128xi32> to vector<32x128xf32>
    %110 = arith.truncf %109 : vector<32x128xf32> to vector<32x128xbf16>
    %111 = tpu.concatenate %99, %110 in 1 : vector<32x128xbf16>, vector<32x128xbf16> -> vector<32x256xbf16>
    %c0_43 = arith.constant 0 : index
    %c0_44 = arith.constant 0 : index
    %112 = vector.load %arg6[%c0_43, %c0_44] : memref<64x32xbf16, #tpu.memory_space<vmem>>, vector<64x32xbf16>
    %cst_45 = arith.constant dense<0.000000e+00> : vector<64x256xf32>
    %113 = tpu.matmul %112, %111, %cst_45 {dimension_numbers = #tpu.dot_dimension_numbers<[1], [0], [0], [1], [0, 0, 1, 1], [], []>} : vector<64x32xbf16>, vector<32x256xbf16>, vector<64x256xf32> -> vector<64x256xf32>
    %c0_46 = arith.constant 0 : index
    %c0_47 = arith.constant 0 : index
    %114 = vector.load %arg7[%c0_46, %c0_47] : memref<64x1xf32, #tpu.memory_space<vmem>>, vector<64x1xf32>
    %115 = vector.broadcast %114 : vector<64x1xf32> to vector<64x256xf32>
    %116 = arith.addf %113, %115 : vector<64x256xf32>
    %cst_48 = arith.constant 0.000000e+00 : f32
    %117 = vector.broadcast %cst_48 : f32 to vector<64x128xf32>
    %cst_49 = arith.constant 5.000000e-01 : f32
    %118 = vector.broadcast %cst_49 : f32 to vector<64x128xf32>
    %119 = arith.mulf %117, %118 : vector<64x128xf32>
    %120 = vector.extract_strided_slice %116 {offsets = [0, 0], sizes = [64, 128], strides = [1, 1]} : vector<64x256xf32> to vector<64x128xf32>
    %121 = arith.addf %119, %120 : vector<64x128xf32>
    %cst_50 = arith.constant 1.000000e+00 : f32
    %122 = vector.broadcast %cst_50 : f32 to vector<64x128xf32>
    %123 = arith.cmpf ogt, %121, %122 : vector<64x128xf32>
    %124 = arith.extui %123 : vector<64x128xi1> to vector<64x128xi32>
    %125 = arith.sitofp %124 : vector<64x128xi32> to vector<64x128xf32>
    %126 = arith.truncf %125 : vector<64x128xf32> to vector<64x128xbf16>
    %cst_51 = arith.constant 0.000000e+00 : f32
    %127 = vector.broadcast %cst_51 : f32 to vector<64x128xf32>
    %128 = arith.select %123, %127, %121 : vector<64x128xi1>, vector<64x128xf32>
    %cst_52 = arith.constant 5.000000e-01 : f32
    %129 = vector.broadcast %cst_52 : f32 to vector<64x128xf32>
    %130 = arith.mulf %128, %129 : vector<64x128xf32>
    %131 = vector.extract_strided_slice %116 {offsets = [0, 128], sizes = [64, 128], strides = [1, 1]} : vector<64x256xf32> to vector<64x128xf32>
    %132 = arith.addf %130, %131 : vector<64x128xf32>
    %cst_53 = arith.constant 1.000000e+00 : f32
    %133 = vector.broadcast %cst_53 : f32 to vector<64x128xf32>
    %134 = arith.cmpf ogt, %132, %133 : vector<64x128xf32>
    %135 = arith.extui %134 : vector<64x128xi1> to vector<64x128xi32>
    %136 = arith.sitofp %135 : vector<64x128xi32> to vector<64x128xf32>
    %137 = arith.truncf %136 : vector<64x128xf32> to vector<64x128xbf16>
    %138 = tpu.concatenate %126, %137 in 1 : vector<64x128xbf16>, vector<64x128xbf16> -> vector<64x256xbf16>
    %c0_54 = arith.constant 0 : index
    %c0_55 = arith.constant 0 : index
    %139 = vector.load %arg8[%c0_54, %c0_55] : memref<32x64xbf16, #tpu.memory_space<vmem>>, vector<32x64xbf16>
    %cst_56 = arith.constant dense<0.000000e+00> : vector<32x256xf32>
    %140 = tpu.matmul %139, %138, %cst_56 {dimension_numbers = #tpu.dot_dimension_numbers<[1], [0], [0], [1], [0, 0, 1, 1], [], []>} : vector<32x64xbf16>, vector<64x256xbf16>, vector<32x256xf32> -> vector<32x256xf32>
    %c0_57 = arith.constant 0 : index
    %c0_58 = arith.constant 0 : index
    %141 = vector.load %arg9[%c0_57, %c0_58] : memref<32x1xf32, #tpu.memory_space<vmem>>, vector<32x1xf32>
    %142 = vector.broadcast %141 : vector<32x1xf32> to vector<32x256xf32>
    %143 = arith.addf %140, %142 : vector<32x256xf32>
    %c0_59 = arith.constant 0 : index
    %c0_60 = arith.constant 0 : index
    %144 = vector.load %arg10[%c0_59, %c0_60] : memref<32x256xf32, #tpu.memory_space<vmem>>, vector<32x256xf32>
    %145 = arith.addf %144, %143 : vector<32x256xf32>
    %c0_61 = arith.constant 0 : index
    %c0_62 = arith.constant 0 : index
    %146 = vector.load %arg10[%c0_61, %c0_62] : memref<32x256xf32, #tpu.memory_space<vmem>>, vector<32x256xf32>
    tpu.vector_store %arg10[%c0_61, %c0_62], %145 {strides = array<i32>} : memref<32x256xf32, #tpu.memory_space<vmem>>, vector<32x256xf32>,
    return
  }
}

</mosaic_0001>

<llo_original>
// kernel: encoder_forward.1
$region0: #{encoder_forward.1}
  #allocation0 [shape = 'u32[]', space=smem, size = 0x4, offset = 0x4, fixed_abs, tag = 'smem constant byte address 0x4 - core index']
  #allocation1 [shape = 'u32[72,128]{1,0:T(1,128)}', space=vmem, size = 0x9000, scoped, tag = 'internal scratch']
  %s0 = inlined_call_operand.vmem [shape: f32[32,256], index: 0, kind: input, shape index: {}]
  %s1 = inlined_call_operand.vmem [shape: bf16[32,32], index: 1, kind: input, shape index: {}]
  %s2 = inlined_call_operand.vmem [shape: f32[32,1], index: 2, kind: input, shape index: {}]
  %s3 = inlined_call_operand.vmem [shape: bf16[4,128,128], index: 3, kind: input, shape index: {}]
  %s4 = inlined_call_operand.vmem [shape: bf16[32,32], index: 4, kind: input, shape index: {}]
  %s5 = inlined_call_operand.vmem [shape: f32[32,1], index: 5, kind: input, shape index: {}]
  %s6 = inlined_call_operand.vmem [shape: bf16[64,32], index: 6, kind: input, shape index: {}]
  %s7 = inlined_call_operand.vmem [shape: f32[64,1], index: 7, kind: input, shape index: {}]
  %s8 = inlined_call_operand.vmem [shape: bf16[32,64], index: 8, kind: input, shape index: {}]
  %s9 = inlined_call_operand.vmem [shape: f32[32,1], index: 9, kind: input, shape index: {}]
  %s10 = inlined_call_operand.vmem [shape: f32[32,256], index: 10, kind: output, shape index: {}]
  %s11 = sld [smem:[#allocation0]]
  $region50: #{encoder_forward.1} parent=0
    _
  %s13 = ssub.s32 1, %s11
  %s14 = scalar_select 0, %s13, %s11
  // Predicated region
  $region2: #{encoder_forward.1} parent=0 // pred_check
    _
  $region3: #{encoder_forward.1} parent=0 // pred_check_branch
    %16 = sbr.rel (0) target = $region5
  $region4: #{encoder_forward.1} parent=0 // pred_region
    _
  $region5: #{encoder_forward.1} parent=0 // pred_fallthru
    _
  // Predicated region
  $region6: #{encoder_forward.1} parent=0 // pred_check
    _
  $region7: #{encoder_forward.1} parent=0 // pred_check_branch
    %18 = sbr.rel (0) target = $region9
  $region8: #{encoder_forward.1} parent=0 // pred_region
    _
  $region9: #{encoder_forward.1} parent=0 // pred_fallthru
    _
  // Predicated region
  $region10: #{encoder_forward.1} parent=0 // pred_check
    _
  $region11: #{encoder_forward.1} parent=0 // pred_check_branch
    %20 = sbr.rel (0) target = $region13
  $region12: #{encoder_forward.1} parent=0 // pred_region
    _
  $region13: #{encoder_forward.1} parent=0 // pred_fallthru
    _
  // Predicated region
  $region14: #{encoder_forward.1} parent=0 // pred_check
    _
  $region15: #{encoder_forward.1} parent=0 // pred_check_branch
    %22 = sbr.rel (0) target = $region17
  $region16: #{encoder_forward.1} parent=0 // pred_region
    _
  $region17: #{encoder_forward.1} parent=0 // pred_fallthru
    _
  // Predicated region
  $region18: #{encoder_forward.1} parent=0 // pred_check
    _
  $region19: #{encoder_forward.1} parent=0 // pred_check_branch
    %24 = sbr.rel (0) target = $region21
  $region20: #{encoder_forward.1} parent=0 // pred_region
    _
  $region21: #{encoder_forward.1} parent=0 // pred_fallthru
    _
  // Predicated region
  $region22: #{encoder_forward.1} parent=0 // pred_check
    _
  $region23: #{encoder_forward.1} parent=0 // pred_check_branch
    %26 = sbr.rel (0) target = $region25
  $region24: #{encoder_forward.1} parent=0 // pred_region
    _
  $region25: #{encoder_forward.1} parent=0 // pred_fallthru
    _
  // Predicated region
  $region26: #{encoder_forward.1} parent=0 // pred_check
    _
  $region27: #{encoder_forward.1} parent=0 // pred_check_branch
    %28 = sbr.rel (0) target = $region29
  $region28: #{encoder_forward.1} parent=0 // pred_region
    _
  $region29: #{encoder_forward.1} parent=0 // pred_fallthru
    _
  // Predicated region
  $region30: #{encoder_forward.1} parent=0 // pred_check
    _
  $region31: #{encoder_forward.1} parent=0 // pred_check_branch
    %30 = sbr.rel (0) target = $region33
  $region32: #{encoder_forward.1} parent=0 // pred_region
    _
  $region33: #{encoder_forward.1} parent=0 // pred_fallthru
    _
  // Predicated region
  $region34: #{encoder_forward.1} parent=0 // pred_check
    _
  $region35: #{encoder_forward.1} parent=0 // pred_check_branch
    %32 = sbr.rel (0) target = $region37
  $region36: #{encoder_forward.1} parent=0 // pred_region
    _
  $region37: #{encoder_forward.1} parent=0 // pred_fallthru
    _
  // Predicated region
  $region38: #{encoder_forward.1} parent=0 // pred_check
    _
  $region39: #{encoder_forward.1} parent=0 // pred_check_branch
    %34 = sbr.rel (0) target = $region41
  $region40: #{encoder_forward.1} parent=0 // pred_region
    _
  $region41: #{encoder_forward.1} parent=0 // pred_fallthru
    _
  %v36 = vld [vmem:[%s0] sm:$0xff]
  %v37 = vld [vmem:[%s0 + $0x8] sm:$0xff]
  %v38 = vld [vmem:[%s0 + $0x10] sm:$0xff]
  %v39 = vld [vmem:[%s0 + $0x18] sm:$0xff]
  %v40 = vld [vmem:[%s0 + $0x20] sm:$0xff]
  %v41 = vld [vmem:[%s0 + $0x28] sm:$0xff]
  %v42 = vld [vmem:[%s0 + $0x30] sm:$0xff]
  %v43 = vld [vmem:[%s0 + $0x38] sm:$0xff]
  %v44 = vadd.f32 %v36, 0.0
  %v45 = vadd.f32 %v38, 0.0
  %v46 = vadd.f32 %v40, 0.0
  %v47 = vadd.f32 %v42, 0.0
  %vm48 = vcmp.gt.f32.partialorder %v44, 1.0
  %vm49 = vcmp.gt.f32.partialorder %v45, 1.0
  %vm50 = vcmp.gt.f32.partialorder %v46, 1.0
  %vm51 = vcmp.gt.f32.partialorder %v47, 1.0
  %v52 = vsel %vm48, 1, 0
  %v53 = vsel %vm49, 1, 0
  %v54 = vsel %vm50, 1, 0
  %v55 = vsel %vm51, 1, 0
  %v56 = vcvt.s32.f32 %v52
  %v57 = vcvt.s32.f32 %v53
  %v58 = vcvt.s32.f32 %v54
  %v59 = vcvt.s32.f32 %v55
  %v60 = vpack.c.bf16 %v56, %v56
  %v61 = vpack.c.bf16 %v57, %v57
  %v62 = vpack.c.bf16 %v58, %v58
  %v63 = vpack.c.bf16 %v59, %v59
  %v64 = vsel %vm48, 0.0, %v44
  %v65 = vsel %vm49, 0.0, %v45
  %v66 = vsel %vm50, 0.0, %v46
  %v67 = vsel %vm51, 0.0, %v47
  %v68 = vmul.f32 %v64, 0.5
  %v69 = vmul.f32 %v65, 0.5
  %v70 = vmul.f32 %v66, 0.5
  %v71 = vmul.f32 %v67, 0.5
  %v72 = vadd.f32 %v68, %v37
  %v73 = vadd.f32 %v69, %v39
  %v74 = vadd.f32 %v70, %v41
  %v75 = vadd.f32 %v71, %v43
  %vm76 = vcmp.gt.f32.partialorder %v72, 1.0
  %vm77 = vcmp.gt.f32.partialorder %v73, 1.0
  %vm78 = vcmp.gt.f32.partialorder %v74, 1.0
  %vm79 = vcmp.gt.f32.partialorder %v75, 1.0
  %v80 = vsel %vm76, 1, 0
  %v81 = vsel %vm77, 1, 0
  %v82 = vsel %vm78, 1, 0
  %v83 = vsel %vm79, 1, 0
  %v84 = vcvt.s32.f32 %v80
  %v85 = vcvt.s32.f32 %v81
  %v86 = vcvt.s32.f32 %v82
  %v87 = vcvt.s32.f32 %v83
  %v88 = vpack.c.bf16 %v84, %v84
  %v89 = vpack.c.bf16 %v85, %v85
  %v90 = vpack.c.bf16 %v86, %v86
  %v91 = vpack.c.bf16 %v87, %v87
  %v96 = vunpack.c.l.b16 %v60
  %v97 = vunpack.c.l.b16 %v61
  %v98 = vunpack.c.l.b16 %v62
  %v99 = vunpack.c.l.b16 %v63
  %v100 = vpack.c.b16 %v97, %v96
  %v101 = vpack.c.b16 %v99, %v98
  %v108 = vunpack.c.l.b16 %v88
  %v109 = vunpack.c.l.b16 %v89
  %v110 = vunpack.c.l.b16 %v90
  %v111 = vunpack.c.l.b16 %v91
  %v112 = vpack.c.b16 %v109, %v108
  %v113 = vpack.c.b16 %v111, %v110
  %v116 = vld [vmem:[%s1] sm:$0xf]
  %v117 = vld [vmem:[%s1 + $0x4] sm:$0xf]
  %v118 = vld [vmem:[%s1 + $0x8] sm:$0xf]
  %v119 = vld [vmem:[%s1 + $0xc] sm:$0xf]
  %v120 = vld [vmem:[%s2] sm:$0xff]
  %v121 = vld [vmem:[%s2 + $0x8] sm:$0xff]
  %v122 = vld [vmem:[%s2 + $0x10] sm:$0xff]
  %v123 = vld [vmem:[%s2 + $0x18] sm:$0xff]
  %125 = vset.pattern.permute.xlu0 0
  %126 = vperm.xlu0 %125, %v120
  %v127 = vpop.permute.xlu0 %126
  %130 = vset.pattern.permute.xlu0 0
  %131 = vperm.xlu0 %130, %v121
  %v132 = vpop.permute.xlu0 %131
  %135 = vset.pattern.permute.xlu0 0
  %136 = vperm.xlu0 %135, %v122
  %v137 = vpop.permute.xlu0 %136
  %140 = vset.pattern.permute.xlu0 0
  %141 = vperm.xlu0 %140, %v123
  %v142 = vpop.permute.xlu0 %141
  %v148 = vunpack.c.l.b16 %v116
  %v149 = vunpack.c.l.b16 %v117
  %v150 = vunpack.c.l.b16 %v118
  %v151 = vunpack.c.l.b16 %v119
  %v152 = vpack.c.b16 %v149, %v148
  %v153 = vpack.c.b16 %v151, %v150
  %vm154 = vcmask 261120
  %v156 = vsel %vm154, %v152, 0
  %v159 = vsel %vm154, %v153, 0
  %161 = vmatpush.bf16.msra.mxu0 0
  %162 = vmatpush.bf16.msra.mxu0 0
  %163 = vmatpush.bf16.msra.mxu0 0
  %164 = vmatpush.bf16.msra.mxu0 0
  %165 = vmatpush.bf16.msra.mxu0 0
  %166 = vmatpush.bf16.msra.mxu0 0
  %167 = vmatpush.bf16.msra.mxu0 %v101
  %168 = vmatpush.bf16.msra.mxu0 %v100
  %169 = vmatmul.bf16.gmra.mxu0 %v156
  %v170 = vpop.f32.mrf.mxu0
  %v171 = vadd.f32 %v127, %v170
  %v172 = vpop.f32.mrf.mxu0
  %v173 = vadd.f32 %v132, %v172
  %174 = vmatmul.bf16.gmra.mxu0 %v159
  %v175 = vpop.f32.mrf.mxu0
  %v176 = vadd.f32 %v137, %v175
  %v177 = vpop.f32.mrf.mxu0
  %v178 = vadd.f32 %v142, %v177
  %179 = vdwg.mxu0
  %180 = vmatpush.bf16.msra.mxu0 0
  %181 = vmatpush.bf16.msra.mxu0 0
  %182 = vmatpush.bf16.msra.mxu0 0
  %183 = vmatpush.bf16.msra.mxu0 0
  %184 = vmatpush.bf16.msra.mxu0 0
  %185 = vmatpush.bf16.msra.mxu0 0
  %186 = vmatpush.bf16.msra.mxu0 %v113
  %187 = vmatpush.bf16.msra.mxu0 %v112
  %188 = vmatmul.bf16.gmra.mxu0 %v156
  %v189 = vpop.f32.mrf.mxu0
  %v190 = vadd.f32 %v127, %v189
  %v191 = vpop.f32.mrf.mxu0
  %v192 = vadd.f32 %v132, %v191
  %193 = vmatmul.bf16.gmra.mxu0 %v159
  %v194 = vpop.f32.mrf.mxu0
  %v195 = vadd.f32 %v137, %v194
  %v196 = vpop.f32.mrf.mxu0
  %v197 = vadd.f32 %v142, %v196
  %198 = vdwg.mxu0
  %v199 = vadd.f32 %v171, 0.0
  %v200 = vadd.f32 %v173, 0.0
  %v201 = vadd.f32 %v176, 0.0
  %v202 = vadd.f32 %v178, 0.0
  %vm203 = vcmp.gt.f32.partialorder %v199, 1.0
  %vm204 = vcmp.gt.f32.partialorder %v200, 1.0
  %vm205 = vcmp.gt.f32.partialorder %v201, 1.0
  %vm206 = vcmp.gt.f32.partialorder %v202, 1.0
  %v207 = vsel %vm203, 1, 0
  %v208 = vsel %vm204, 1, 0
  %v209 = vsel %vm205, 1, 0
  %v210 = vsel %vm206, 1, 0
  %v211 = vcvt.s32.f32 %v207
  %v212 = vcvt.s32.f32 %v208
  %v213 = vcvt.s32.f32 %v209
  %v214 = vcvt.s32.f32 %v210
  %v215 = vsel %vm203, 0.0, %v199
  %v216 = vsel %vm204, 0.0, %v200
  %v217 = vsel %vm205, 0.0, %v201
  %v218 = vsel %vm206, 0.0, %v202
  %v219 = vmul.f32 %v215, 0.5
  %v220 = vmul.f32 %v216, 0.5
  %v221 = vmul.f32 %v217, 0.5
  %v222 = vmul.f32 %v218, 0.5
  %v223 = vadd.f32 %v219, %v190
  %v224 = vadd.f32 %v220, %v192
  %v225 = vadd.f32 %v221, %v195
  %v226 = vadd.f32 %v222, %v197
  %vm227 = vcmp.gt.f32.partialorder %v223, 1.0
  %vm228 = vcmp.gt.f32.partialorder %v224, 1.0
  %vm229 = vcmp.gt.f32.partialorder %v225, 1.0
  %vm230 = vcmp.gt.f32.partialorder %v226, 1.0
  %v231 = vsel %vm227, 1, 0
  %v232 = vsel %vm228, 1, 0
  %v233 = vsel %vm229, 1, 0
  %v234 = vsel %vm230, 1, 0
  %v235 = vcvt.s32.f32 %v231
  %v236 = vcvt.s32.f32 %v232
  %v237 = vcvt.s32.f32 %v233
  %v238 = vcvt.s32.f32 %v234
  %v239 = vld [vmem:[%s3] sm:$0xf]
  %v240 = vld [vmem:[%s3 + $0x4] sm:$0xf]
  %v241 = vld [vmem:[%s3 + $0x8] sm:$0xf]
  %v242 = vld [vmem:[%s3 + $0xc] sm:$0xf]
  %v243 = vld [vmem:[%s3 + $0x10] sm:$0xf]
  %v244 = vld [vmem:[%s3 + $0x14] sm:$0xf]
  %v245 = vld [vmem:[%s3 + $0x18] sm:$0xf]
  %v246 = vld [vmem:[%s3 + $0x1c] sm:$0xf]
  %v247 = vld [vmem:[%s3 + $0x20] sm:$0xf]
  %v248 = vld [vmem:[%s3 + $0x24] sm:$0xf]
  %v249 = vld [vmem:[%s3 + $0x28] sm:$0xf]
  %v250 = vld [vmem:[%s3 + $0x2c] sm:$0xf]
  %v251 = vld [vmem:[%s3 + $0x30] sm:$0xf]
  %v252 = vld [vmem:[%s3 + $0x34] sm:$0xf]
  %v253 = vld [vmem:[%s3 + $0x38] sm:$0xf]
  %v254 = vld [vmem:[%s3 + $0x3c] sm:$0xf]
  %v255 = vld [vmem:[%s3 + $0x40] sm:$0xf]
  %v256 = vld [vmem:[%s3 + $0x44] sm:$0xf]
  %v257 = vld [vmem:[%s3 + $0x48] sm:$0xf]
  %v258 = vld [vmem:[%s3 + $0x4c] sm:$0xf]
  %v259 = vld [vmem:[%s3 + $0x50] sm:$0xf]
  %v260 = vld [vmem:[%s3 + $0x54] sm:$0xf]
  %v261 = vld [vmem:[%s3 + $0x58] sm:$0xf]
  %v262 = vld [vmem:[%s3 + $0x5c] sm:$0xf]
  %v263 = vld [vmem:[%s3 + $0x60] sm:$0xf]
  %v264 = vld [vmem:[%s3 + $0x64] sm:$0xf]
  %v265 = vld [vmem:[%s3 + $0x68] sm:$0xf]
  %v266 = vld [vmem:[%s3 + $0x6c] sm:$0xf]
  %v267 = vld [vmem:[%s3 + $0x70] sm:$0xf]
  %v268 = vld [vmem:[%s3 + $0x74] sm:$0xf]
  %v269 = vld [vmem:[%s3 + $0x78] sm:$0xf]
  %v270 = vld [vmem:[%s3 + $0x7c] sm:$0xf]
  %v271 = vld [vmem:[%s3 + $0x80] sm:$0xf]
  %v272 = vld [vmem:[%s3 + $0x84] sm:$0xf]
  %v273 = vld [vmem:[%s3 + $0x88] sm:$0xf]
  %v274 = vld [vmem:[%s3 + $0x8c] sm:$0xf]
  %v275 = vld [vmem:[%s3 + $0x90] sm:$0xf]
  %v276 = vld [vmem:[%s3 + $0x94] sm:$0xf]
  %v277 = vld [vmem:[%s3 + $0x98] sm:$0xf]
  %v278 = vld [vmem:[%s3 + $0x9c] sm:$0xf]
  %v279 = vld [vmem:[%s3 + $0xa0] sm:$0xf]
  %v280 = vld [vmem:[%s3 + $0xa4] sm:$0xf]
  %v281 = vld [vmem:[%s3 + $0xa8] sm:$0xf]
  %v282 = vld [vmem:[%s3 + $0xac] sm:$0xf]
  %v283 = vld [vmem:[%s3 + $0xb0] sm:$0xf]
  %v284 = vld [vmem:[%s3 + $0xb4] sm:$0xf]
  %v285 = vld [vmem:[%s3 + $0xb8] sm:$0xf]
  %v286 = vld [vmem:[%s3 + $0xbc] sm:$0xf]
  %v287 = vld [vmem:[%s3 + $0xc0] sm:$0xf]
  %v288 = vld [vmem:[%s3 + $0xc4] sm:$0xf]
  %v289 = vld [vmem:[%s3 + $0xc8] sm:$0xf]
  %v290 = vld [vmem:[%s3 + $0xcc] sm:$0xf]
  %v291 = vld [vmem:[%s3 + $0xd0] sm:$0xf]
  %v292 = vld [vmem:[%s3 + $0xd4] sm:$0xf]
  %v293 = vld [vmem:[%s3 + $0xd8] sm:$0xf]
  %v294 = vld [vmem:[%s3 + $0xdc] sm:$0xf]
  %v295 = vld [vmem:[%s3 + $0xe0] sm:$0xf]
  %v296 = vld [vmem:[%s3 + $0xe4] sm:$0xf]
  %v297 = vld [vmem:[%s3 + $0xe8] sm:$0xf]
  %v298 = vld [vmem:[%s3 + $0xec] sm:$0xf]
  %v299 = vld [vmem:[%s3 + $0xf0] sm:$0xf]
  %v300 = vld [vmem:[%s3 + $0xf4] sm:$0xf]
  %v301 = vld [vmem:[%s3 + $0xf8] sm:$0xf]
  %v302 = vld [vmem:[%s3 + $0xfc] sm:$0xf]
  %v303 = vpack.c.bf16 %v211, %v211
  %v304 = vpack.c.bf16 %v212, %v212
  %v305 = vpack.c.bf16 %v213, %v213
  %v306 = vpack.c.bf16 %v214, %v214
  %v323 = vunpack.c.l.b16 %v239
  %v324 = vunpack.c.l.b16 %v240
  %v325 = vunpack.c.l.b16 %v241
  %v326 = vunpack.c.l.b16 %v242
  %v327 = vunpack.c.l.b16 %v243
  %v328 = vunpack.c.l.b16 %v244
  %v329 = vunpack.c.l.b16 %v245
  %v330 = vunpack.c.l.b16 %v246
  %v331 = vunpack.c.l.b16 %v247
  %v332 = vunpack.c.l.b16 %v248
  %v333 = vunpack.c.l.b16 %v249
  %v334 = vunpack.c.l.b16 %v250
  %v335 = vunpack.c.l.b16 %v251
  %v336 = vunpack.c.l.b16 %v252
  %v337 = vunpack.c.l.b16 %v253
  %v338 = vunpack.c.l.b16 %v254
  %v339 = vpack.c.b16 %v324, %v323
  %v340 = vpack.c.b16 %v326, %v325
  %v341 = vpack.c.b16 %v328, %v327
  %v342 = vpack.c.b16 %v330, %v329
  %v343 = vpack.c.b16 %v332, %v331
  %v344 = vpack.c.b16 %v334, %v333
  %v345 = vpack.c.b16 %v336, %v335
  %v346 = vpack.c.b16 %v338, %v337
  %355 = vmatpush.bf16.msra.mxu0 %v346
  %356 = vmatpush.bf16.msra.mxu0 %v345
  %357 = vmatpush.bf16.msra.mxu0 %v344
  %358 = vmatpush.bf16.msra.mxu0 %v343
  %359 = vmatpush.bf16.msra.mxu0 %v342
  %360 = vmatpush.bf16.msra.mxu0 %v341
  %361 = vmatpush.bf16.msra.mxu0 %v340
  %362 = vmatpush.bf16.msra.mxu0 %v339
  %363 = vmatmul.bf16.gmra.mxu0 %v303
  %v364 = vpop.f32.mrf.mxu0
  %v365 = vadd.f32 0.0, %v364
  %v366 = vpop.f32.mrf.mxu0
  %367 = vdwg.mxu0
  %v384 = vunpack.c.l.b16 %v255
  %v385 = vunpack.c.l.b16 %v256
  %v386 = vunpack.c.l.b16 %v257
  %v387 = vunpack.c.l.b16 %v258
  %v388 = vunpack.c.l.b16 %v259
  %v389 = vunpack.c.l.b16 %v260
  %v390 = vunpack.c.l.b16 %v261
  %v391 = vunpack.c.l.b16 %v262
  %v392 = vunpack.c.l.b16 %v263
  %v393 = vunpack.c.l.b16 %v264
  %v394 = vunpack.c.l.b16 %v265
  %v395 = vunpack.c.l.b16 %v266
  %v396 = vunpack.c.l.b16 %v267
  %v397 = vunpack.c.l.b16 %v268
  %v398 = vunpack.c.l.b16 %v269
  %v399 = vunpack.c.l.b16 %v270
  %v400 = vpack.c.b16 %v385, %v384
  %v401 = vpack.c.b16 %v387, %v386
  %v402 = vpack.c.b16 %v389, %v388
  %v403 = vpack.c.b16 %v391, %v390
  %v404 = vpack.c.b16 %v393, %v392
  %v405 = vpack.c.b16 %v395, %v394
  %v406 = vpack.c.b16 %v397, %v396
  %v407 = vpack.c.b16 %v399, %v398
  %416 = vmatpush.bf16.msra.mxu0 %v407
  %417 = vmatpush.bf16.msra.mxu0 %v406
  %418 = vmatpush.bf16.msra.mxu0 %v405
  %419 = vmatpush.bf16.msra.mxu0 %v404
  %420 = vmatpush.bf16.msra.mxu0 %v403
  %421 = vmatpush.bf16.msra.mxu0 %v402
  %422 = vmatpush.bf16.msra.mxu0 %v401
  %423 = vmatpush.bf16.msra.mxu0 %v400
  %424 = vmatmul.bf16.gmra.mxu0 %v304
  %v425 = vpop.f32.mrf.mxu0
  %v426 = vadd.f32 0.0, %v425
  %v427 = vpop.f32.mrf.mxu0
  %428 = vdwg.mxu0
  %v445 = vunpack.c.l.b16 %v271
  %v446 = vunpack.c.l.b16 %v272
  %v447 = vunpack.c.l.b16 %v273
  %v448 = vunpack.c.l.b16 %v274
  %v449 = vunpack.c.l.b16 %v275
  %v450 = vunpack.c.l.b16 %v276
  %v451 = vunpack.c.l.b16 %v277
  %v452 = vunpack.c.l.b16 %v278
  %v453 = vunpack.c.l.b16 %v279
  %v454 = vunpack.c.l.b16 %v280
  %v455 = vunpack.c.l.b16 %v281
  %v456 = vunpack.c.l.b16 %v282
  %v457 = vunpack.c.l.b16 %v283
  %v458 = vunpack.c.l.b16 %v284
  %v459 = vunpack.c.l.b16 %v285
  %v460 = vunpack.c.l.b16 %v286
  %v461 = vpack.c.b16 %v446, %v445
  %v462 = vpack.c.b16 %v448, %v447
  %v463 = vpack.c.b16 %v450, %v449
  %v464 = vpack.c.b16 %v452, %v451
  %v465 = vpack.c.b16 %v454, %v453
  %v466 = vpack.c.b16 %v456, %v455
  %v467 = vpack.c.b16 %v458, %v457
  %v468 = vpack.c.b16 %v460, %v459
  %477 = vmatpush.bf16.msra.mxu0 %v468
  %478 = vmatpush.bf16.msra.mxu0 %v467
  %479 = vmatpush.bf16.msra.mxu0 %v466
  %480 = vmatpush.bf16.msra.mxu0 %v465
  %481 = vmatpush.bf16.msra.mxu0 %v464
  %482 = vmatpush.bf16.msra.mxu0 %v463
  %483 = vmatpush.bf16.msra.mxu0 %v462
  %484 = vmatpush.bf16.msra.mxu0 %v461
  %485 = vmatmul.bf16.gmra.mxu0 %v305
  %v486 = vpop.f32.mrf.mxu0
  %v487 = vadd.f32 0.0, %v486
  %v488 = vpop.f32.mrf.mxu0
  %489 = vdwg.mxu0
  %v506 = vunpack.c.l.b16 %v287
  %v507 = vunpack.c.l.b16 %v288
  %v508 = vunpack.c.l.b16 %v289
  %v509 = vunpack.c.l.b16 %v290
  %v510 = vunpack.c.l.b16 %v291
  %v511 = vunpack.c.l.b16 %v292
  %v512 = vunpack.c.l.b16 %v293
  %v513 = vunpack.c.l.b16 %v294
  %v514 = vunpack.c.l.b16 %v295
  %v515 = vunpack.c.l.b16 %v296
  %v516 = vunpack.c.l.b16 %v297
  %v517 = vunpack.c.l.b16 %v298
  %v518 = vunpack.c.l.b16 %v299
  %v519 = vunpack.c.l.b16 %v300
  %v520 = vunpack.c.l.b16 %v301
  %v521 = vunpack.c.l.b16 %v302
  %v522 = vpack.c.b16 %v507, %v506
  %v523 = vpack.c.b16 %v509, %v508
  %v524 = vpack.c.b16 %v511, %v510
  %v525 = vpack.c.b16 %v513, %v512
  %v526 = vpack.c.b16 %v515, %v514
  %v527 = vpack.c.b16 %v517, %v516
  %v528 = vpack.c.b16 %v519, %v518
  %v529 = vpack.c.b16 %v521, %v520
  %538 = vmatpush.bf16.msra.mxu0 %v529
  %539 = vmatpush.bf16.msra.mxu0 %v528
  %540 = vmatpush.bf16.msra.mxu0 %v527
  %541 = vmatpush.bf16.msra.mxu0 %v526
  %542 = vmatpush.bf16.msra.mxu0 %v525
  %543 = vmatpush.bf16.msra.mxu0 %v524
  %544 = vmatpush.bf16.msra.mxu0 %v523
  %545 = vmatpush.bf16.msra.mxu0 %v522
  %546 = vmatmul.bf16.gmra.mxu0 %v306
  %v547 = vpop.f32.mrf.mxu0
  %v548 = vadd.f32 0.0, %v547
  %v549 = vpop.f32.mrf.mxu0
  %550 = vdwg.mxu0
  %v551 = vpack.c.bf16 %v235, %v235
  %v552 = vpack.c.bf16 %v236, %v236
  %v553 = vpack.c.bf16 %v237, %v237
  %v554 = vpack.c.bf16 %v238, %v238
  %555 = vmatpush.bf16.msra.mxu0 %v346
  %556 = vmatpush.bf16.msra.mxu0 %v345
  %557 = vmatpush.bf16.msra.mxu0 %v344
  %558 = vmatpush.bf16.msra.mxu0 %v343
  %559 = vmatpush.bf16.msra.mxu0 %v342
  %560 = vmatpush.bf16.msra.mxu0 %v341
  %561 = vmatpush.bf16.msra.mxu0 %v340
  %562 = vmatpush.bf16.msra.mxu0 %v339
  %563 = vmatmul.bf16.gmra.mxu0 %v551
  %v564 = vpop.f32.mrf.mxu0
  %v565 = vadd.f32 0.0, %v564
  %v566 = vpop.f32.mrf.mxu0
  %567 = vdwg.mxu0
  %568 = vmatpush.bf16.msra.mxu0 %v407
  %569 = vmatpush.bf16.msra.mxu0 %v406
  %570 = vmatpush.bf16.msra.mxu0 %v405
  %571 = vmatpush.bf16.msra.mxu0 %v404
  %572 = vmatpush.bf16.msra.mxu0 %v403
  %573 = vmatpush.bf16.msra.mxu0 %v402
  %574 = vmatpush.bf16.msra.mxu0 %v401
  %575 = vmatpush.bf16.msra.mxu0 %v400
  %576 = vmatmul.bf16.gmra.mxu0 %v552
  %v577 = vpop.f32.mrf.mxu0
  %v578 = vadd.f32 0.0, %v577
  %v579 = vpop.f32.mrf.mxu0
  %580 = vdwg.mxu0
  %581 = vmatpush.bf16.msra.mxu0 %v468
  %582 = vmatpush.bf16.msra.mxu0 %v467
  %583 = vmatpush.bf16.msra.mxu0 %v466
  %584 = vmatpush.bf16.msra.mxu0 %v465
  %585 = vmatpush.bf16.msra.mxu0 %v464
  %586 = vmatpush.bf16.msra.mxu0 %v463
  %587 = vmatpush.bf16.msra.mxu0 %v462
  %588 = vmatpush.bf16.msra.mxu0 %v461
  %589 = vmatmul.bf16.gmra.mxu0 %v553
  %v590 = vpop.f32.mrf.mxu0
  %v591 = vadd.f32 0.0, %v590
  %v592 = vpop.f32.mrf.mxu0
  %593 = vdwg.mxu0
  %594 = vmatpush.bf16.msra.mxu0 %v529
  %595 = vmatpush.bf16.msra.mxu0 %v528
  %596 = vmatpush.bf16.msra.mxu0 %v527
  %597 = vmatpush.bf16.msra.mxu0 %v526
  %598 = vmatpush.bf16.msra.mxu0 %v525
  %599 = vmatpush.bf16.msra.mxu0 %v524
  %600 = vmatpush.bf16.msra.mxu0 %v523
  %601 = vmatpush.bf16.msra.mxu0 %v522
  %602 = vmatmul.bf16.gmra.mxu0 %v554
  %v603 = vpop.f32.mrf.mxu0
  %v604 = vadd.f32 0.0, %v603
  %v605 = vpop.f32.mrf.mxu0
  %606 = vdwg.mxu0
  %v607 = vadd.f32 %v365, 0.0
  %v608 = vadd.f32 %v426, 0.0
  %v609 = vadd.f32 %v487, 0.0
  %v610 = vadd.f32 %v548, 0.0
  %vm611 = vcmp.gt.f32.partialorder %v607, 1.0
  %vm612 = vcmp.gt.f32.partialorder %v608, 1.0
  %vm613 = vcmp.gt.f32.partialorder %v609, 1.0
  %vm614 = vcmp.gt.f32.partialorder %v610, 1.0
  %v615 = vsel %vm611, 1, 0
  %v616 = vsel %vm612, 1, 0
  %v617 = vsel %vm613, 1, 0
  %v618 = vsel %vm614, 1, 0
  %v619 = vcvt.s32.f32 %v615
  %v620 = vcvt.s32.f32 %v616
  %v621 = vcvt.s32.f32 %v617
  %v622 = vcvt.s32.f32 %v618
  %v623 = vpack.c.bf16 %v619, %v619
  %v624 = vpack.c.bf16 %v620, %v620
  %v625 = vpack.c.bf16 %v621, %v621
  %v626 = vpack.c.bf16 %v622, %v622
  %v627 = vsel %vm611, 0.0, %v607
  %v628 = vsel %vm612, 0.0, %v608
  %v629 = vsel %vm613, 0.0, %v609
  %v630 = vsel %vm614, 0.0, %v610
  %v631 = vmul.f32 %v627, 0.5
  %v632 = vmul.f32 %v628, 0.5
  %v633 = vmul.f32 %v629, 0.5
  %v634 = vmul.f32 %v630, 0.5
  %v635 = vadd.f32 %v631, %v565
  %v636 = vadd.f32 %v632, %v578
  %v637 = vadd.f32 %v633, %v591
  %v638 = vadd.f32 %v634, %v604
  %vm639 = vcmp.gt.f32.partialorder %v635, 1.0
  %vm640 = vcmp.gt.f32.partialorder %v636, 1.0
  %vm641 = vcmp.gt.f32.partialorder %v637, 1.0
  %vm642 = vcmp.gt.f32.partialorder %v638, 1.0
  %v643 = vsel %vm639, 1, 0
  %v644 = vsel %vm640, 1, 0
  %v645 = vsel %vm641, 1, 0
  %v646 = vsel %vm642, 1, 0
  %v647 = vcvt.s32.f32 %v643
  %v648 = vcvt.s32.f32 %v644
  %v649 = vcvt.s32.f32 %v645
  %v650 = vcvt.s32.f32 %v646
  %v651 = vpack.c.bf16 %v647, %v647
  %v652 = vpack.c.bf16 %v648, %v648
  %v653 = vpack.c.bf16 %v649, %v649
  %v654 = vpack.c.bf16 %v650, %v650
  %v659 = vunpack.c.l.b16 %v623
  %v660 = vunpack.c.l.b16 %v624
  %v661 = vunpack.c.l.b16 %v625
  %v662 = vunpack.c.l.b16 %v626
  %v663 = vpack.c.b16 %v660, %v659
  %v664 = vpack.c.b16 %v662, %v661
  %v671 = vunpack.c.l.b16 %v651
  %v672 = vunpack.c.l.b16 %v652
  %v673 = vunpack.c.l.b16 %v653
  %v674 = vunpack.c.l.b16 %v654
  %v675 = vpack.c.b16 %v672, %v671
  %v676 = vpack.c.b16 %v674, %v673
  %v679 = vld [vmem:[%s4] sm:$0xf]
  %v680 = vld [vmem:[%s4 + $0x4] sm:$0xf]
  %v681 = vld [vmem:[%s4 + $0x8] sm:$0xf]
  %v682 = vld [vmem:[%s4 + $0xc] sm:$0xf]
  %v683 = vld [vmem:[%s5] sm:$0xff]
  %v684 = vld [vmem:[%s5 + $0x8] sm:$0xff]
  %v685 = vld [vmem:[%s5 + $0x10] sm:$0xff]
  %v686 = vld [vmem:[%s5 + $0x18] sm:$0xff]
  %688 = vset.pattern.permute.xlu0 0
  %689 = vperm.xlu0 %688, %v683
  %v690 = vpop.permute.xlu0 %689
  %693 = vset.pattern.permute.xlu0 0
  %694 = vperm.xlu0 %693, %v684
  %v695 = vpop.permute.xlu0 %694
  %698 = vset.pattern.permute.xlu0 0
  %699 = vperm.xlu0 %698, %v685
  %v700 = vpop.permute.xlu0 %699
  %703 = vset.pattern.permute.xlu0 0
  %704 = vperm.xlu0 %703, %v686
  %v705 = vpop.permute.xlu0 %704
  %v711 = vunpack.c.l.b16 %v679
  %v712 = vunpack.c.l.b16 %v680
  %v713 = vunpack.c.l.b16 %v681
  %v714 = vunpack.c.l.b16 %v682
  %v715 = vpack.c.b16 %v712, %v711
  %v716 = vpack.c.b16 %v714, %v713
  %v718 = vsel %vm154, %v715, 0
  %v721 = vsel %vm154, %v716, 0
  %723 = vmatpush.bf16.msra.mxu0 0
  %724 = vmatpush.bf16.msra.mxu0 0
  %725 = vmatpush.bf16.msra.mxu0 0
  %726 = vmatpush.bf16.msra.mxu0 0
  %727 = vmatpush.bf16.msra.mxu0 0
  %728 = vmatpush.bf16.msra.mxu0 0
  %729 = vmatpush.bf16.msra.mxu0 %v664
  %730 = vmatpush.bf16.msra.mxu0 %v663
  %731 = vmatmul.bf16.gmra.mxu0 %v718
  %v732 = vpop.f32.mrf.mxu0
  %v733 = vadd.f32 %v690, %v732
  %v734 = vpop.f32.mrf.mxu0
  %v735 = vadd.f32 %v695, %v734
  %736 = vmatmul.bf16.gmra.mxu0 %v721
  %v737 = vpop.f32.mrf.mxu0
  %v738 = vadd.f32 %v700, %v737
  %v739 = vpop.f32.mrf.mxu0
  %v740 = vadd.f32 %v705, %v739
  %741 = vdwg.mxu0
  %742 = vmatpush.bf16.msra.mxu0 0
  %743 = vmatpush.bf16.msra.mxu0 0
  %744 = vmatpush.bf16.msra.mxu0 0
  %745 = vmatpush.bf16.msra.mxu0 0
  %746 = vmatpush.bf16.msra.mxu0 0
  %747 = vmatpush.bf16.msra.mxu0 0
  %748 = vmatpush.bf16.msra.mxu0 %v676
  %749 = vmatpush.bf16.msra.mxu0 %v675
  %750 = vmatmul.bf16.gmra.mxu0 %v718
  %v751 = vpop.f32.mrf.mxu0
  %v752 = vadd.f32 %v690, %v751
  %v753 = vpop.f32.mrf.mxu0
  %v754 = vadd.f32 %v695, %v753
  %755 = vmatmul.bf16.gmra.mxu0 %v721
  %v756 = vpop.f32.mrf.mxu0
  %v757 = vadd.f32 %v700, %v756
  %v758 = vpop.f32.mrf.mxu0
  %v759 = vadd.f32 %v705, %v758
  %760 = vdwg.mxu0
  %v761 = vld [vmem:[%s0] sm:$0xff]
  %v762 = vld [vmem:[%s0 + $0x8] sm:$0xff]
  %v763 = vld [vmem:[%s0 + $0x10] sm:$0xff]
  %v764 = vld [vmem:[%s0 + $0x18] sm:$0xff]
  %v765 = vld [vmem:[%s0 + $0x20] sm:$0xff]
  %v766 = vld [vmem:[%s0 + $0x28] sm:$0xff]
  %v767 = vld [vmem:[%s0 + $0x30] sm:$0xff]
  %v768 = vld [vmem:[%s0 + $0x38] sm:$0xff]
  %v769 = vadd.f32 %v761, %v733
  %v770 = vadd.f32 %v762, %v752
  %v771 = vadd.f32 %v763, %v735
  %v772 = vadd.f32 %v764, %v754
  %v773 = vadd.f32 %v765, %v738
  %v774 = vadd.f32 %v766, %v757
  %v775 = vadd.f32 %v767, %v740
  %v776 = vadd.f32 %v768, %v759
  %777 = vst [vmem:[%s10] sm:$0xff] %v769
  %778 = vst [vmem:[%s10 + $0x8] sm:$0xff] %v770
  %779 = vst [vmem:[%s10 + $0x10] sm:$0xff] %v771
  %780 = vst [vmem:[%s10 + $0x18] sm:$0xff] %v772
  %781 = vst [vmem:[%s10 + $0x20] sm:$0xff] %v773
  %782 = vst [vmem:[%s10 + $0x28] sm:$0xff] %v774
  %783 = vst [vmem:[%s10 + $0x30] sm:$0xff] %v775
  %784 = vst [vmem:[%s10 + $0x38] sm:$0xff] %v776
  %v785 = vadd.f32 %v769, 0.0
  %v786 = vadd.f32 %v771, 0.0
  %v787 = vadd.f32 %v773, 0.0
  %v788 = vadd.f32 %v775, 0.0
  %vm789 = vcmp.gt.f32.partialorder %v785, 1.0
  %vm790 = vcmp.gt.f32.partialorder %v786, 1.0
  %vm791 = vcmp.gt.f32.partialorder %v787, 1.0
  %vm792 = vcmp.gt.f32.partialorder %v788, 1.0
  %v793 = vsel %vm789, 1, 0
  %v794 = vsel %vm790, 1, 0
  %v795 = vsel %vm791, 1, 0
  %v796 = vsel %vm792, 1, 0
  %v797 = vcvt.s32.f32 %v793
  %v798 = vcvt.s32.f32 %v794
  %v799 = vcvt.s32.f32 %v795
  %v800 = vcvt.s32.f32 %v796
  %v801 = vpack.c.bf16 %v797, %v797
  %v802 = vpack.c.bf16 %v798, %v798
  %v803 = vpack.c.bf16 %v799, %v799
  %v804 = vpack.c.bf16 %v800, %v800
  %v805 = vsel %vm789, 0.0, %v785
  %v806 = vsel %vm790, 0.0, %v786
  %v807 = vsel %vm791, 0.0, %v787
  %v808 = vsel %vm792, 0.0, %v788
  %v809 = vmul.f32 %v805, 0.5
  %v810 = vmul.f32 %v806, 0.5
  %v811 = vmul.f32 %v807, 0.5
  %v812 = vmul.f32 %v808, 0.5
  %v813 = vadd.f32 %v809, %v770
  %v814 = vadd.f32 %v810, %v772
  %v815 = vadd.f32 %v811, %v774
  %v816 = vadd.f32 %v812, %v776
  %vm817 = vcmp.gt.f32.partialorder %v813, 1.0
  %vm818 = vcmp.gt.f32.partialorder %v814, 1.0
  %vm819 = vcmp.gt.f32.partialorder %v815, 1.0
  %vm820 = vcmp.gt.f32.partialorder %v816, 1.0
  %v821 = vsel %vm817, 1, 0
  %v822 = vsel %vm818, 1, 0
  %v823 = vsel %vm819, 1, 0
  %v824 = vsel %vm820, 1, 0
  %v825 = vcvt.s32.f32 %v821
  %v826 = vcvt.s32.f32 %v822
  %v827 = vcvt.s32.f32 %v823
  %v828 = vcvt.s32.f32 %v824
  %v829 = vpack.c.bf16 %v825, %v825
  %v830 = vpack.c.bf16 %v826, %v826
  %v831 = vpack.c.bf16 %v827, %v827
  %v832 = vpack.c.bf16 %v828, %v828
  %v837 = vunpack.c.l.b16 %v801
  %v838 = vunpack.c.l.b16 %v802
  %v839 = vunpack.c.l.b16 %v803
  %v840 = vunpack.c.l.b16 %v804
  %v841 = vpack.c.b16 %v838, %v837
  %v842 = vpack.c.b16 %v840, %v839
  %v849 = vunpack.c.l.b16 %v829
  %v850 = vunpack.c.l.b16 %v830
  %v851 = vunpack.c.l.b16 %v831
  %v852 = vunpack.c.l.b16 %v832
  %v853 = vpack.c.b16 %v850, %v849
  %v854 = vpack.c.b16 %v852, %v851
  %v857 = vld [vmem:[%s6] sm:$0xf]
  %v858 = vld [vmem:[%s6 + $0x4] sm:$0xf]
  %v859 = vld [vmem:[%s6 + $0x8] sm:$0xf]
  %v860 = vld [vmem:[%s6 + $0xc] sm:$0xf]
  %v861 = vld [vmem:[%s6 + $0x10] sm:$0xf]
  %v862 = vld [vmem:[%s6 + $0x14] sm:$0xf]
  %v863 = vld [vmem:[%s6 + $0x18] sm:$0xf]
  %v864 = vld [vmem:[%s6 + $0x1c] sm:$0xf]
  %v865 = vld [vmem:[%s7] sm:$0xff]
  %v866 = vld [vmem:[%s7 + $0x8] sm:$0xff]
  %v867 = vld [vmem:[%s7 + $0x10] sm:$0xff]
  %v868 = vld [vmem:[%s7 + $0x18] sm:$0xff]
  %v869 = vld [vmem:[%s7 + $0x20] sm:$0xff]
  %v870 = vld [vmem:[%s7 + $0x28] sm:$0xff]
  %v871 = vld [vmem:[%s7 + $0x30] sm:$0xff]
  %v872 = vld [vmem:[%s7 + $0x38] sm:$0xff]
  %874 = vset.pattern.permute.xlu0 0
  %875 = vperm.xlu0 %874, %v865
  %v876 = vpop.permute.xlu0 %875
  %879 = vset.pattern.permute.xlu0 0
  %880 = vperm.xlu0 %879, %v866
  %v881 = vpop.permute.xlu0 %880
  %884 = vset.pattern.permute.xlu0 0
  %885 = vperm.xlu0 %884, %v867
  %v886 = vpop.permute.xlu0 %885
  %889 = vset.pattern.permute.xlu0 0
  %890 = vperm.xlu0 %889, %v868
  %v891 = vpop.permute.xlu0 %890
  %894 = vset.pattern.permute.xlu0 0
  %895 = vperm.xlu0 %894, %v869
  %v896 = vpop.permute.xlu0 %895
  %899 = vset.pattern.permute.xlu0 0
  %900 = vperm.xlu0 %899, %v870
  %v901 = vpop.permute.xlu0 %900
  %904 = vset.pattern.permute.xlu0 0
  %905 = vperm.xlu0 %904, %v871
  %v906 = vpop.permute.xlu0 %905
  %909 = vset.pattern.permute.xlu0 0
  %910 = vperm.xlu0 %909, %v872
  %v911 = vpop.permute.xlu0 %910
  %v921 = vunpack.c.l.b16 %v857
  %v922 = vunpack.c.l.b16 %v858
  %v923 = vunpack.c.l.b16 %v859
  %v924 = vunpack.c.l.b16 %v860
  %v925 = vunpack.c.l.b16 %v861
  %v926 = vunpack.c.l.b16 %v862
  %v927 = vunpack.c.l.b16 %v863
  %v928 = vunpack.c.l.b16 %v864
  %v929 = vpack.c.b16 %v922, %v921
  %v930 = vpack.c.b16 %v924, %v923
  %v931 = vpack.c.b16 %v926, %v925
  %v932 = vpack.c.b16 %v928, %v927
  %v934 = vsel %vm154, %v929, 0
  %v937 = vsel %vm154, %v930, 0
  %v940 = vsel %vm154, %v931, 0
  %v943 = vsel %vm154, %v932, 0
  %945 = vmatpush.bf16.msra.mxu0 0
  %946 = vmatpush.bf16.msra.mxu0 0
  %947 = vmatpush.bf16.msra.mxu0 0
  %948 = vmatpush.bf16.msra.mxu0 0
  %949 = vmatpush.bf16.msra.mxu0 0
  %950 = vmatpush.bf16.msra.mxu0 0
  %951 = vmatpush.bf16.msra.mxu0 %v842
  %952 = vmatpush.bf16.msra.mxu0 %v841
  %953 = vmatmul.bf16.gmra.mxu0 %v934
  %v954 = vpop.f32.mrf.mxu0
  %v955 = vadd.f32 %v876, %v954
  %v956 = vpop.f32.mrf.mxu0
  %v957 = vadd.f32 %v881, %v956
  %958 = vmatmul.bf16.gmra.mxu0 %v937
  %v959 = vpop.f32.mrf.mxu0
  %v960 = vadd.f32 %v886, %v959
  %v961 = vpop.f32.mrf.mxu0
  %v962 = vadd.f32 %v891, %v961
  %963 = vmatmul.bf16.gmra.mxu0 %v940
  %v964 = vpop.f32.mrf.mxu0
  %v965 = vadd.f32 %v896, %v964
  %v966 = vpop.f32.mrf.mxu0
  %v967 = vadd.f32 %v901, %v966
  %968 = vmatmul.bf16.gmra.mxu0 %v943
  %v969 = vpop.f32.mrf.mxu0
  %v970 = vadd.f32 %v906, %v969
  %v971 = vpop.f32.mrf.mxu0
  %v972 = vadd.f32 %v911, %v971
  %973 = vdwg.mxu0
  %974 = vmatpush.bf16.msra.mxu0 0
  %975 = vmatpush.bf16.msra.mxu0 0
  %976 = vmatpush.bf16.msra.mxu0 0
  %977 = vmatpush.bf16.msra.mxu0 0
  %978 = vmatpush.bf16.msra.mxu0 0
  %979 = vmatpush.bf16.msra.mxu0 0
  %980 = vmatpush.bf16.msra.mxu0 %v854
  %981 = vmatpush.bf16.msra.mxu0 %v853
  %982 = vmatmul.bf16.gmra.mxu0 %v934
  %v983 = vpop.f32.mrf.mxu0
  %v984 = vadd.f32 %v876, %v983
  %v985 = vpop.f32.mrf.mxu0
  %v986 = vadd.f32 %v881, %v985
  %987 = vmatmul.bf16.gmra.mxu0 %v937
  %v988 = vpop.f32.mrf.mxu0
  %v989 = vadd.f32 %v886, %v988
  %v990 = vpop.f32.mrf.mxu0
  %v991 = vadd.f32 %v891, %v990
  %992 = vmatmul.bf16.gmra.mxu0 %v940
  %v993 = vpop.f32.mrf.mxu0
  %v994 = vadd.f32 %v896, %v993
  %v995 = vpop.f32.mrf.mxu0
  %v996 = vadd.f32 %v901, %v995
  %997 = vmatmul.bf16.gmra.mxu0 %v943
  %v998 = vpop.f32.mrf.mxu0
  %v999 = vadd.f32 %v906, %v998
  %v1000 = vpop.f32.mrf.mxu0
  %v1001 = vadd.f32 %v911, %v1000
  %1002 = vdwg.mxu0
  %v1003 = vadd.f32 %v955, 0.0
  %v1004 = vadd.f32 %v957, 0.0
  %v1005 = vadd.f32 %v960, 0.0
  %v1006 = vadd.f32 %v962, 0.0
  %v1007 = vadd.f32 %v965, 0.0
  %v1008 = vadd.f32 %v967, 0.0
  %v1009 = vadd.f32 %v970, 0.0
  %v1010 = vadd.f32 %v972, 0.0
  %vm1011 = vcmp.gt.f32.partialorder %v1003, 1.0
  %vm1012 = vcmp.gt.f32.partialorder %v1004, 1.0
  %vm1013 = vcmp.gt.f32.partialorder %v1005, 1.0
  %vm1014 = vcmp.gt.f32.partialorder %v1006, 1.0
  %vm1015 = vcmp.gt.f32.partialorder %v1007, 1.0
  %vm1016 = vcmp.gt.f32.partialorder %v1008, 1.0
  %vm1017 = vcmp.gt.f32.partialorder %v1009, 1.0
  %vm1018 = vcmp.gt.f32.partialorder %v1010, 1.0
  %v1019 = vsel %vm1011, 1, 0
  %v1020 = vsel %vm1012, 1, 0
  %v1021 = vsel %vm1013, 1, 0
  %v1022 = vsel %vm1014, 1, 0
  %v1023 = vsel %vm1015, 1, 0
  %v1024 = vsel %vm1016, 1, 0
  %v1025 = vsel %vm1017, 1, 0
  %v1026 = vsel %vm1018, 1, 0
  %v1027 = vcvt.s32.f32 %v1019
  %v1028 = vcvt.s32.f32 %v1020
  %v1029 = vcvt.s32.f32 %v1021
  %v1030 = vcvt.s32.f32 %v1022
  %v1031 = vcvt.s32.f32 %v1023
  %v1032 = vcvt.s32.f32 %v1024
  %v1033 = vcvt.s32.f32 %v1025
  %v1034 = vcvt.s32.f32 %v1026
  %v1035 = vpack.c.bf16 %v1027, %v1027
  %v1036 = vpack.c.bf16 %v1028, %v1028
  %v1037 = vpack.c.bf16 %v1029, %v1029
  %v1038 = vpack.c.bf16 %v1030, %v1030
  %v1039 = vpack.c.bf16 %v1031, %v1031
  %v1040 = vpack.c.bf16 %v1032, %v1032
  %v1041 = vpack.c.bf16 %v1033, %v1033
  %v1042 = vpack.c.bf16 %v1034, %v1034
  %v1043 = vsel %vm1011, 0.0, %v1003
  %v1044 = vsel %vm1012, 0.0, %v1004
  %v1045 = vsel %vm1013, 0.0, %v1005
  %v1046 = vsel %vm1014, 0.0, %v1006
  %v1047 = vsel %vm1015, 0.0, %v1007
  %v1048 = vsel %vm1016, 0.0, %v1008
  %v1049 = vsel %vm1017, 0.0, %v1009
  %v1050 = vsel %vm1018, 0.0, %v1010
  %v1051 = vmul.f32 %v1043, 0.5
  %v1052 = vmul.f32 %v1044, 0.5
  %v1053 = vmul.f32 %v1045, 0.5
  %v1054 = vmul.f32 %v1046, 0.5
  %v1055 = vmul.f32 %v1047, 0.5
  %v1056 = vmul.f32 %v1048, 0.5
  %v1057 = vmul.f32 %v1049, 0.5
  %v1058 = vmul.f32 %v1050, 0.5
  %v1059 = vadd.f32 %v1051, %v984
  %v1060 = vadd.f32 %v1052, %v986
  %v1061 = vadd.f32 %v1053, %v989
  %v1062 = vadd.f32 %v1054, %v991
  %v1063 = vadd.f32 %v1055, %v994
  %v1064 = vadd.f32 %v1056, %v996
  %v1065 = vadd.f32 %v1057, %v999
  %v1066 = vadd.f32 %v1058, %v1001
  %vm1067 = vcmp.gt.f32.partialorder %v1059, 1.0
  %vm1068 = vcmp.gt.f32.partialorder %v1060, 1.0
  %vm1069 = vcmp.gt.f32.partialorder %v1061, 1.0
  %vm1070 = vcmp.gt.f32.partialorder %v1062, 1.0
  %vm1071 = vcmp.gt.f32.partialorder %v1063, 1.0
  %vm1072 = vcmp.gt.f32.partialorder %v1064, 1.0
  %vm1073 = vcmp.gt.f32.partialorder %v1065, 1.0
  %vm1074 = vcmp.gt.f32.partialorder %v1066, 1.0
  %v1075 = vsel %vm1067, 1, 0
  %v1076 = vsel %vm1068, 1, 0
  %v1077 = vsel %vm1069, 1, 0
  %v1078 = vsel %vm1070, 1, 0
  %v1079 = vsel %vm1071, 1, 0
  %v1080 = vsel %vm1072, 1, 0
  %v1081 = vsel %vm1073, 1, 0
  %v1082 = vsel %vm1074, 1, 0
  %v1083 = vcvt.s32.f32 %v1075
  %v1084 = vcvt.s32.f32 %v1076
  %v1085 = vcvt.s32.f32 %v1077
  %v1086 = vcvt.s32.f32 %v1078
  %v1087 = vcvt.s32.f32 %v1079
  %v1088 = vcvt.s32.f32 %v1080
  %v1089 = vcvt.s32.f32 %v1081
  %v1090 = vcvt.s32.f32 %v1082
  %v1091 = vpack.c.bf16 %v1083, %v1083
  %v1092 = vpack.c.bf16 %v1084, %v1084
  %v1093 = vpack.c.bf16 %v1085, %v1085
  %v1094 = vpack.c.bf16 %v1086, %v1086
  %v1095 = vpack.c.bf16 %v1087, %v1087
  %v1096 = vpack.c.bf16 %v1088, %v1088
  %v1097 = vpack.c.bf16 %v1089, %v1089
  %v1098 = vpack.c.bf16 %v1090, %v1090
  %v1107 = vunpack.c.l.b16 %v1035
  %v1108 = vunpack.c.l.b16 %v1036
  %v1109 = vunpack.c.l.b16 %v1037
  %v1110 = vunpack.c.l.b16 %v1038
  %v1111 = vunpack.c.l.b16 %v1039
  %v1112 = vunpack.c.l.b16 %v1040
  %v1113 = vunpack.c.l.b16 %v1041
  %v1114 = vunpack.c.l.b16 %v1042
  %v1115 = vpack.c.b16 %v1108, %v1107
  %v1116 = vpack.c.b16 %v1110, %v1109
  %v1117 = vpack.c.b16 %v1112, %v1111
  %v1118 = vpack.c.b16 %v1114, %v1113
  %v1131 = vunpack.c.l.b16 %v1091
  %v1132 = vunpack.c.l.b16 %v1092
  %v1133 = vunpack.c.l.b16 %v1093
  %v1134 = vunpack.c.l.b16 %v1094
  %v1135 = vunpack.c.l.b16 %v1095
  %v1136 = vunpack.c.l.b16 %v1096
  %v1137 = vunpack.c.l.b16 %v1097
  %v1138 = vunpack.c.l.b16 %v1098
  %v1139 = vpack.c.b16 %v1132, %v1131
  %v1140 = vpack.c.b16 %v1134, %v1133
  %v1141 = vpack.c.b16 %v1136, %v1135
  %v1142 = vpack.c.b16 %v1138, %v1137
  %v1147 = vld [vmem:[%s8] sm:$0xf]
  %v1148 = vld [vmem:[%s8 + $0x4] sm:$0xf]
  %v1149 = vld [vmem:[%s8 + $0x8] sm:$0xf]
  %v1150 = vld [vmem:[%s8 + $0xc] sm:$0xf]
  %v1151 = vld [vmem:[%s9] sm:$0xff]
  %v1152 = vld [vmem:[%s9 + $0x8] sm:$0xff]
  %v1153 = vld [vmem:[%s9 + $0x10] sm:$0xff]
  %v1154 = vld [vmem:[%s9 + $0x18] sm:$0xff]
  %1156 = vset.pattern.permute.xlu0 0
  %1157 = vperm.xlu0 %1156, %v1151
  %v1158 = vpop.permute.xlu0 %1157
  %1161 = vset.pattern.permute.xlu0 0
  %1162 = vperm.xlu0 %1161, %v1152
  %v1163 = vpop.permute.xlu0 %1162
  %1166 = vset.pattern.permute.xlu0 0
  %1167 = vperm.xlu0 %1166, %v1153
  %v1168 = vpop.permute.xlu0 %1167
  %1171 = vset.pattern.permute.xlu0 0
  %1172 = vperm.xlu0 %1171, %v1154
  %v1173 = vpop.permute.xlu0 %1172
  %v1179 = vunpack.c.l.b16 %v1147
  %v1180 = vunpack.c.l.b16 %v1148
  %v1181 = vunpack.c.l.b16 %v1149
  %v1182 = vunpack.c.l.b16 %v1150
  %v1183 = vpack.c.b16 %v1180, %v1179
  %v1184 = vpack.c.b16 %v1182, %v1181
  %vm1185 = vcmask 523264
  %v1187 = vsel %vm1185, %v1183, 0
  %v1190 = vsel %vm1185, %v1184, 0
  %1192 = vmatpush.bf16.msra.mxu0 0
  %1193 = vmatpush.bf16.msra.mxu0 0
  %1194 = vmatpush.bf16.msra.mxu0 0
  %1195 = vmatpush.bf16.msra.mxu0 0
  %1196 = vmatpush.bf16.msra.mxu0 %v1118
  %1197 = vmatpush.bf16.msra.mxu0 %v1117
  %1198 = vmatpush.bf16.msra.mxu0 %v1116
  %1199 = vmatpush.bf16.msra.mxu0 %v1115
  %1200 = vmatmul.bf16.gmra.mxu0 %v1187
  %v1201 = vpop.f32.mrf.mxu0
  %v1202 = vadd.f32 %v1158, %v1201
  %v1203 = vpop.f32.mrf.mxu0
  %v1204 = vadd.f32 %v1163, %v1203
  %1205 = vmatmul.bf16.gmra.mxu0 %v1190
  %v1206 = vpop.f32.mrf.mxu0
  %v1207 = vadd.f32 %v1168, %v1206
  %v1208 = vpop.f32.mrf.mxu0
  %v1209 = vadd.f32 %v1173, %v1208
  %1210 = vdwg.mxu0
  %1211 = vmatpush.bf16.msra.mxu0 0
  %1212 = vmatpush.bf16.msra.mxu0 0
  %1213 = vmatpush.bf16.msra.mxu0 0
  %1214 = vmatpush.bf16.msra.mxu0 0
  %1215 = vmatpush.bf16.msra.mxu0 %v1142
  %1216 = vmatpush.bf16.msra.mxu0 %v1141
  %1217 = vmatpush.bf16.msra.mxu0 %v1140
  %1218 = vmatpush.bf16.msra.mxu0 %v1139
  %1219 = vmatmul.bf16.gmra.mxu0 %v1187
  %v1220 = vpop.f32.mrf.mxu0
  %v1221 = vadd.f32 %v1158, %v1220
  %v1222 = vpop.f32.mrf.mxu0
  %v1223 = vadd.f32 %v1163, %v1222
  %1224 = vmatmul.bf16.gmra.mxu0 %v1190
  %v1225 = vpop.f32.mrf.mxu0
  %v1226 = vadd.f32 %v1168, %v1225
  %v1227 = vpop.f32.mrf.mxu0
  %v1228 = vadd.f32 %v1173, %v1227
  %1229 = vdwg.mxu0
  %v1230 = vld [vmem:[%s10] sm:$0xff]
  %v1231 = vld [vmem:[%s10 + $0x8] sm:$0xff]
  %v1232 = vld [vmem:[%s10 + $0x10] sm:$0xff]
  %v1233 = vld [vmem:[%s10 + $0x18] sm:$0xff]
  %v1234 = vld [vmem:[%s10 + $0x20] sm:$0xff]
  %v1235 = vld [vmem:[%s10 + $0x28] sm:$0xff]
  %v1236 = vld [vmem:[%s10 + $0x30] sm:$0xff]
  %v1237 = vld [vmem:[%s10 + $0x38] sm:$0xff]
  %v1238 = vadd.f32 %v1230, %v1202
  %v1239 = vadd.f32 %v1231, %v1221
  %v1240 = vadd.f32 %v1232, %v1204
  %v1241 = vadd.f32 %v1233, %v1223
  %v1242 = vadd.f32 %v1234, %v1207
  %v1243 = vadd.f32 %v1235, %v1226
  %v1244 = vadd.f32 %v1236, %v1209
  %v1245 = vadd.f32 %v1237, %v1228
  %1246 = vst [vmem:[%s10] sm:$0xff] %v1238
  %1247 = vst [vmem:[%s10 + $0x8] sm:$0xff] %v1239
  %1248 = vst [vmem:[%s10 + $0x10] sm:$0xff] %v1240
  %1249 = vst [vmem:[%s10 + $0x18] sm:$0xff] %v1241
  %1250 = vst [vmem:[%s10 + $0x20] sm:$0xff] %v1242
  %1251 = vst [vmem:[%s10 + $0x28] sm:$0xff] %v1243
  %1252 = vst [vmem:[%s10 + $0x30] sm:$0xff] %v1244
  %1253 = vst [vmem:[%s10 + $0x38] sm:$0xff] %v1245
  // Predicated region
  $region42: #{encoder_forward.1} parent=0 // pred_check
    _
  $region43: #{encoder_forward.1} parent=0 // pred_check_branch
    %1255 = sbr.rel (0) target = $region45
  $region44: #{encoder_forward.1} parent=0 // pred_region
    _
  $region45: #{encoder_forward.1} parent=0 // pred_fallthru
    _
  // Predicated region
  $region46: #{encoder_forward.1} parent=0 // pred_check
    _
  $region47: #{encoder_forward.1} parent=0 // pred_check_branch
    %1257 = sbr.rel (0) target = $region49
  $region48: #{encoder_forward.1} parent=0 // pred_region
    _
  $region49: #{encoder_forward.1} parent=0 // pred_fallthru
    _

</llo_original>
